<compile_context>
chip_gen: v7x
topology: tpu7x:2x2x1
jax: 0.10.0
libtpu: 0.0.40
codegen_flags: <defaults>
</compile_context>

<pallas_src>
import jax
import jax.numpy as jnp
from jax.experimental import pallas as pl
from jax.experimental.pallas import tpu as pltpu


def _round_up(n, m):
    return ((n + m - 1) // m) * m


def _cdiv(a, b):
    return -(-a // b)


def dqn_kernel(x_ref, w1_ref, b1_ref, w2_ref, b2_ref, w3_ref, b3_ref, o_ref):
    # x streams in as unpadded f32; cast to bf16 on the VPU (cheaper than a wrapper pass).
    x = x_ref[...].astype(jnp.bfloat16)
    # Layer 1: bf16 MXU matmul, f32 accumulate; bias + ReLU in f32 on the VPU.
    h1 = jnp.dot(x, w1_ref[...], preferred_element_type=jnp.float32)
    h1 = jnp.maximum(h1 + b1_ref[...], 0.0).astype(jnp.bfloat16)
    # Layer 2: Linear + ReLU.
    h2 = jnp.dot(h1, w2_ref[...], preferred_element_type=jnp.float32)
    h2 = jnp.maximum(h2 + b2_ref[...], 0.0).astype(jnp.bfloat16)
    # Layer 3: Linear (no activation); store directly at the unpadded output width.
    out = jnp.dot(h2, w3_ref[...], preferred_element_type=jnp.float32)
    o_ref[...] = (out + b3_ref[...]).astype(o_ref.dtype)


def _pad2(a, rows, cols, dtype):
    """Zero-pad a 2-D array to (rows, cols) and cast."""
    out = jnp.zeros((rows, cols), dtype)
    return out.at[: a.shape[0], : a.shape[1]].set(a.astype(dtype))


def prepare_dqn_params(params):
    """One-time padding/cast of the parameters (reuse the result across forward calls).

    Only the hidden dim is padded to a multiple of 128 lanes (zero padding is inert:
    padded w cols / bias lanes are zero and feed zero w rows).  Input/output feature
    dims stay unpadded — full-extent blocks are legal and keep HBM traffic minimal.
    Weights -> bf16 (MXU operands); biases -> f32 (VPU epilogue).
    """
    w1, b1, w2, b2, w3, b3 = (params["w1"], params["b1"], params["w2"],
                              params["b2"], params["w3"], params["b3"])
    d_in, d_h = w1.shape
    d_out = w3.shape[1]
    d_h_p = _round_up(d_h, 128)
    return {
        "w1": _pad2(w1, d_in, d_h_p, jnp.bfloat16),
        "b1": _pad2(b1, 1, d_h_p, jnp.float32),
        "w2": _pad2(w2, d_h_p, d_h_p, jnp.bfloat16),
        "b2": _pad2(b2, 1, d_h_p, jnp.float32),
        "w3": _pad2(w3, d_h_p, d_out, jnp.bfloat16),
        "b3": b3.astype(jnp.float32).reshape(1, d_out),
    }


def _choose_batch_tile(B, batch_tile):
    """Batch tile: multiple of 16 (bf16 sublane packing), dividing B about evenly,
    and >= 2 tiles whenever B > 16 so v7x's two TensorCores both get work."""
    if B <= 16:
        return B  # single full-extent block (legal for any B)
    bt = max(16, (int(batch_tile) // 16) * 16)  # validate/round caller-supplied tile
    n_tiles = max(_cdiv(B, bt), 2)
    tb = _round_up(_cdiv(B, n_tiles), 16)
    return min(tb, (B // 16) * 16)


def _vmem_limit_bytes(tb, d_in, d_h_p, d_out):
    """Scoped-VMEM budget from the actual working set (+ headroom).  Defaults are only
    16 MiB (v5e) / 32 MiB (v6e, v7x) — far below physical.
    NOTE(v7x): physical VMEM is 64 MiB/TC; for very large hidden dims reduce batch_tile
    rather than relying on this cap."""
    lane = lambda n: _round_up(max(int(n), 1), 128)
    bf16, f32 = 2, 4
    weights = (d_in * d_h_p + d_h_p * d_h_p + d_h_p * lane(d_out)) * bf16  # Buffered(1)
    biases = (2 * d_h_p + lane(d_out)) * f32
    x_bufs = 2 * tb * lane(d_in) * f32           # double-buffered streamed input blocks
    o_bufs = 2 * tb * lane(d_out) * f32          # double-buffered streamed output blocks
    temps = 2 * tb * d_h_p * (f32 + bf16) + tb * lane(d_out) * f32  # h1/h2 (+bf16) + acc
    need = weights + biases + x_bufs + o_bufs + temps
    return int(min(max(2 * need + (8 << 20), 32 << 20), 128 << 20))


def dqn_forward(x, prepared, *, batch_tile=512):
    """x: [B, input_dim] float32.  prepared: output of prepare_dqn_params()."""
    w1, b1, w2, b2, w3, b3 = (prepared["w1"], prepared["b1"], prepared["w2"],
                              prepared["b2"], prepared["w3"], prepared["b3"])
    B, d_in = x.shape
    d_h_p = w2.shape[0]
    d_out = w3.shape[1]
    assert w1.shape == (d_in, d_h_p), "params not prepared for this input_dim"

    tb = _choose_batch_tile(B, batch_tile)
    grid = (_cdiv(B, tb),)  # trailing partial block handled by Pallas edge masking

    def resident(shape):
        # Constant block index across the grid -> stays VMEM-resident; Buffered(1)
        # drops the pointless second buffer (the block is DMA'd exactly once anyway).
        return pl.BlockSpec(shape, lambda i: (0,) * len(shape),
                            pipeline_mode=pl.Buffered(buffer_count=1))

    out = pl.pallas_call(
        dqn_kernel,
        out_shape=jax.ShapeDtypeStruct((B, d_out), jnp.float32),
        grid=grid,
        in_specs=[
            pl.BlockSpec((tb, d_in), lambda i: (i, 0)),  # x: streamed over batch, unpadded
            resident((d_in, d_h_p)),                     # w1
            resident((1, d_h_p)),                        # b1
            resident((d_h_p, d_h_p)),                    # w2
            resident((1, d_h_p)),                        # b2
            resident((d_h_p, d_out)),                    # w3
            resident((1, d_out)),                        # b3
        ],
        out_specs=pl.BlockSpec((tb, d_out), lambda i: (i, 0)),
        compiler_params=pltpu.CompilerParams(
            dimension_semantics=("parallel",),
            vmem_limit_bytes=_vmem_limit_bytes(tb, d_in, d_h_p, d_out),
        ),
    )(x, w1, b1, w2, b2, w3, b3)
    return out


def init_dqn_params(key, input_dim, output_dim, hidden_dim):
    """PyTorch nn.Linear-style init, U(-1/sqrt(fan_in), 1/sqrt(fan_in)).
    Weights stored pre-transposed as (in, out); biases as (1, out)."""
    def linear(k, fan_in, fan_out):
        kw, kb = jax.random.split(k)
        bound = 1.0 / jnp.sqrt(fan_in)
        w = jax.random.uniform(kw, (fan_in, fan_out), jnp.float32, -bound, bound)
        b = jax.random.uniform(kb, (1, fan_out), jnp.float32, -bound, bound)
        return w, b

    k1, k2, k3 = jax.random.split(key, 3)
    w1, b1 = linear(k1, input_dim, hidden_dim)
    w2, b2 = linear(k2, hidden_dim, hidden_dim)
    w3, b3 = linear(k3, hidden_dim, output_dim)
    return {"w1": w1, "b1": b1, "w2": w2, "b2": b2, "w3": w3, "b3": b3}


def dqn_reference(x, p):
    """Pure-JAX reference with the same bf16-MXU / f32-accumulate casts as the kernel."""
    xb = x.astype(jnp.bfloat16)
    w1 = p["w1"].astype(jnp.bfloat16)
    w2 = p["w2"].astype(jnp.bfloat16)
    w3 = p["w3"].astype(jnp.bfloat16)
    h1 = jnp.maximum(
        jnp.dot(xb, w1, preferred_element_type=jnp.float32) + p["b1"], 0.0
    ).astype(jnp.bfloat16)
    h2 = jnp.maximum(
        jnp.dot(h1, w2, preferred_element_type=jnp.float32) + p["b2"], 0.0
    ).astype(jnp.bfloat16)
    return jnp.dot(h2, w3, preferred_element_type=jnp.float32) + p["b3"]


if __name__ == "__main__":
    input_dim, output_dim, hidden_dim = 16, 8, 32
    batch = 2

    key = jax.random.PRNGKey(0)
    kx, kp = jax.random.split(key)
    x = jax.random.normal(kx, (batch, input_dim), dtype=jnp.float32)
    params = init_dqn_params(kp, input_dim, output_dim, hidden_dim)
    prepared = prepare_dqn_params(params)  # one-time pad/cast; reuse across calls

    out = dqn_forward(x, prepared)
    jax.block_until_ready(out)

    ref = dqn_reference(x, params)
    assert out.shape == (batch, output_dim)
    assert jnp.allclose(out, ref, atol=1e-2, rtol=1e-2)

    print("KERNEL_OK")
</pallas_src>

<mosaic_0001>
module attributes {stable_mosaic.version = 11 : i64} {
  func.func @dqn_kernel(%arg0: i32, %arg1: memref<2x16xf32, #tpu.memory_space<vmem>>, %arg2: memref<16x128xbf16, #tpu.memory_space<vmem>>, %arg3: memref<1x128xf32, #tpu.memory_space<vmem>>, %arg4: memref<128x128xbf16, #tpu.memory_space<vmem>>, %arg5: memref<1x128xf32, #tpu.memory_space<vmem>>, %arg6: memref<128x8xbf16, #tpu.memory_space<vmem>>, %arg7: memref<1x8xf32, #tpu.memory_space<vmem>>, %arg8: memref<2x8xf32, #tpu.memory_space<vmem>>) attributes {dimension_semantics = [#tpu.dimension_semantics<parallel>], iteration_bounds = array<i64: 1>, scalar_prefetch = 0 : i64, scratch_operands = 0 : i64, tpu.core_type = #tpu.core_type<tc>, window_params = [{transform_indices = @transform_0, window_bounds = array<i64: 2, 16>}, {pipeline_mode = #tpu.pipeline_mode<synchronous>, transform_indices = @transform_1, window_bounds = array<i64: 16, 128>}, {pipeline_mode = #tpu.pipeline_mode<synchronous>, transform_indices = @transform_2, window_bounds = array<i64: 1, 128>}, {pipeline_mode = #tpu.pipeline_mode<synchronous>, transform_indices = @transform_3, window_bounds = array<i64: 128, 128>}, {pipeline_mode = #tpu.pipeline_mode<synchronous>, transform_indices = @transform_4, window_bounds = array<i64: 1, 128>}, {pipeline_mode = #tpu.pipeline_mode<synchronous>, transform_indices = @transform_5, window_bounds = array<i64: 128, 8>}, {pipeline_mode = #tpu.pipeline_mode<synchronous>, transform_indices = @transform_6, window_bounds = array<i64: 1, 8>}, {transform_indices = @transform_7, window_bounds = array<i64: 2, 8>}]} {
    %c0 = arith.constant 0 : index
    %c0_0 = arith.constant 0 : index
    %0 = vector.load %arg1[%c0, %c0_0] : memref<2x16xf32, #tpu.memory_space<vmem>>, vector<2x16xf32>
    %1 = arith.truncf %0 : vector<2x16xf32> to vector<2x16xbf16>
    %c0_1 = arith.constant 0 : index
    %c0_2 = arith.constant 0 : index
    %2 = vector.load %arg2[%c0_1, %c0_2] : memref<16x128xbf16, #tpu.memory_space<vmem>>, vector<16x128xbf16>
    %cst = arith.constant dense<0.000000e+00> : vector<2x128xf32>
    %3 = tpu.matmul %1, %2, %cst {dimension_numbers = #tpu.dot_dimension_numbers<[1], [0], [0], [1], [0, 0, 1, 1], [], []>} : vector<2x16xbf16>, vector<16x128xbf16>, vector<2x128xf32> -> vector<2x128xf32>
    %c0_3 = arith.constant 0 : index
    %c0_4 = arith.constant 0 : index
    %4 = vector.load %arg3[%c0_3, %c0_4] : memref<1x128xf32, #tpu.memory_space<vmem>>, vector<1x128xf32>
    %5 = vector.broadcast %4 : vector<1x128xf32> to vector<2x128xf32>
    %6 = arith.addf %3, %5 : vector<2x128xf32>
    %cst_5 = arith.constant 0.000000e+00 : f32
    %7 = vector.broadcast %cst_5 : f32 to vector<2x128xf32>
    %8 = arith.maximumf %6, %7 : vector<2x128xf32>
    %9 = arith.truncf %8 : vector<2x128xf32> to vector<2x128xbf16>
    %c0_6 = arith.constant 0 : index
    %c0_7 = arith.constant 0 : index
    %10 = vector.load %arg4[%c0_6, %c0_7] : memref<128x128xbf16, #tpu.memory_space<vmem>>, vector<128x128xbf16>
    %cst_8 = arith.constant dense<0.000000e+00> : vector<2x128xf32>
    %11 = tpu.matmul %9, %10, %cst_8 {dimension_numbers = #tpu.dot_dimension_numbers<[1], [0], [0], [1], [0, 0, 1, 1], [], []>} : vector<2x128xbf16>, vector<128x128xbf16>, vector<2x128xf32> -> vector<2x128xf32>
    %c0_9 = arith.constant 0 : index
    %c0_10 = arith.constant 0 : index
    %12 = vector.load %arg5[%c0_9, %c0_10] : memref<1x128xf32, #tpu.memory_space<vmem>>, vector<1x128xf32>
    %13 = vector.broadcast %12 : vector<1x128xf32> to vector<2x128xf32>
    %14 = arith.addf %11, %13 : vector<2x128xf32>
    %cst_11 = arith.constant 0.000000e+00 : f32
    %15 = vector.broadcast %cst_11 : f32 to vector<2x128xf32>
    %16 = arith.maximumf %14, %15 : vector<2x128xf32>
    %17 = arith.truncf %16 : vector<2x128xf32> to vector<2x128xbf16>
    %c0_12 = arith.constant 0 : index
    %c0_13 = arith.constant 0 : index
    %18 = vector.load %arg6[%c0_12, %c0_13] : memref<128x8xbf16, #tpu.memory_space<vmem>>, vector<128x8xbf16>
    %cst_14 = arith.constant dense<0.000000e+00> : vector<2x8xf32>
    %19 = tpu.matmul %17, %18, %cst_14 {dimension_numbers = #tpu.dot_dimension_numbers<[1], [0], [0], [1], [0, 0, 1, 1], [], []>} : vector<2x128xbf16>, vector<128x8xbf16>, vector<2x8xf32> -> vector<2x8xf32>
    %c0_15 = arith.constant 0 : index
    %c0_16 = arith.constant 0 : index
    %20 = vector.load %arg7[%c0_15, %c0_16] : memref<1x8xf32, #tpu.memory_space<vmem>>, vector<1x8xf32>
    %21 = vector.broadcast %20 : vector<1x8xf32> to vector<2x8xf32>
    %22 = arith.addf %19, %21 : vector<2x8xf32>
    %c0_17 = arith.constant 0 : index
    %c0_18 = arith.constant 0 : index
    %23 = vector.load %arg8[%c0_17, %c0_18] : memref<2x8xf32, #tpu.memory_space<vmem>>, vector<2x8xf32>
    tpu.vector_store %arg8[%c0_17, %c0_18], %22 {strides = array<i32>} : memref<2x8xf32, #tpu.memory_space<vmem>>, vector<2x8xf32>,
    return
  }
  func.func @transform_0(%arg0: i32) -> (i32, i32) {
    %c0_i32 = arith.constant 0 : i32
    %c0_i32_0 = arith.constant 0 : i32
    return %arg0, %c0_i32 : i32, i32
  }
  func.func @transform_1(%arg0: i32) -> (i32, i32) {
    %c0_i32 = arith.constant 0 : i32
    %c0_i32_0 = arith.constant 0 : i32
    %c0_i32_1 = arith.constant 0 : i32
    return %c0_i32, %c0_i32_0 : i32, i32
  }
  func.func @transform_2(%arg0: i32) -> (i32, i32) {
    %c0_i32 = arith.constant 0 : i32
    %c0_i32_0 = arith.constant 0 : i32
    %c0_i32_1 = arith.constant 0 : i32
    return %c0_i32, %c0_i32_0 : i32, i32
  }
  func.func @transform_3(%arg0: i32) -> (i32, i32) {
    %c0_i32 = arith.constant 0 : i32
    %c0_i32_0 = arith.constant 0 : i32
    %c0_i32_1 = arith.constant 0 : i32
    return %c0_i32, %c0_i32_0 : i32, i32
  }
  func.func @transform_4(%arg0: i32) -> (i32, i32) {
    %c0_i32 = arith.constant 0 : i32
    %c0_i32_0 = arith.constant 0 : i32
    %c0_i32_1 = arith.constant 0 : i32
    return %c0_i32, %c0_i32_0 : i32, i32
  }
  func.func @transform_5(%arg0: i32) -> (i32, i32) {
    %c0_i32 = arith.constant 0 : i32
    %c0_i32_0 = arith.constant 0 : i32
    %c0_i32_1 = arith.constant 0 : i32
    return %c0_i32, %c0_i32_0 : i32, i32
  }
  func.func @transform_6(%arg0: i32) -> (i32, i32) {
    %c0_i32 = arith.constant 0 : i32
    %c0_i32_0 = arith.constant 0 : i32
    %c0_i32_1 = arith.constant 0 : i32
    return %c0_i32, %c0_i32_0 : i32, i32
  }
  func.func @transform_7(%arg0: i32) -> (i32, i32) {
    %c0_i32 = arith.constant 0 : i32
    %c0_i32_0 = arith.constant 0 : i32
    return %arg0, %c0_i32 : i32, i32
  }
}

</mosaic_0001>

<llo_original>
// kernel: tpu_custom_call.1
$region0: #{tpu_custom_call.1}
  #allocation0 [shape = 'u32[]', space=smem, size = 0x4, offset = 0x4, fixed_abs, tag = 'smem constant byte address 0x4 - core index']
  #allocation1 [shape = 'u32[144,128]{1,0:T(1,128)}', space=vmem, size = 0x12000, scoped, tag = 'internal scratch']
  %s0 = inlined_call_operand.vmem [shape: f32[2,16], index: 0, kind: input, shape index: {}]
  %s1 = inlined_call_operand.vmem [shape: bf16[16,128], index: 1, kind: input, shape index: {}]
  %s2 = inlined_call_operand.vmem [shape: f32[1,128], index: 2, kind: input, shape index: {}]
  %s3 = inlined_call_operand.vmem [shape: bf16[128,128], index: 3, kind: input, shape index: {}]
  %s4 = inlined_call_operand.vmem [shape: f32[1,128], index: 4, kind: input, shape index: {}]
  %s5 = inlined_call_operand.vmem [shape: bf16[128,8], index: 5, kind: input, shape index: {}]
  %s6 = inlined_call_operand.vmem [shape: f32[1,8], index: 6, kind: input, shape index: {}]
  %s7 = inlined_call_operand.hbm [shape: f32[2,8], index: 7, kind: output, shape index: {}]
  %s8 = sld [smem:[#allocation0]]
  $region38: #{tpu_custom_call.1} parent=0
    _
  %s10 = ssub.s32 1, %s8
  %s11 = scalar_select 0, %s10, %s8
  $region1: #{tpu_custom_call.1} parent=0
    #allocation2 [shape = 'u8[1024]{0}', space=vmem, size = 0x400, scoped, tag = 'output window, operand 0, single buffered']
    #allocation3 [shape = 's32[1]{0}', space=sflag, size = 0x4, scoped, tag = 'scoped memory for tpu_custom_call.1']
    %12 = vsyncpa [#allocation3], 0
    // Predicated region
    $region2: #{tpu_custom_call.1} parent=1 // pred_check
      _
    $region3: #{tpu_custom_call.1} parent=1 // pred_check_branch
      %14 = sbr.rel (0) target = $region5
    $region4: #{tpu_custom_call.1} parent=1 // pred_region
      _
    $region5: #{tpu_custom_call.1} parent=1 // pred_fallthru
      _
    // Predicated region
    $region6: #{tpu_custom_call.1} parent=1 // pred_check
      _
    $region7: #{tpu_custom_call.1} parent=1 // pred_check_branch
      %16 = sbr.rel (0) target = $region9
    $region8: #{tpu_custom_call.1} parent=1 // pred_region
      _
    $region9: #{tpu_custom_call.1} parent=1 // pred_fallthru
      _
    // Predicated region
    $region10: #{tpu_custom_call.1} parent=1 // pred_check
      _
    $region11: #{tpu_custom_call.1} parent=1 // pred_check_branch
      %18 = sbr.rel (0) target = $region13
    $region12: #{tpu_custom_call.1} parent=1 // pred_region
      _
    $region13: #{tpu_custom_call.1} parent=1 // pred_fallthru
      _
    // Predicated region
    $region14: #{tpu_custom_call.1} parent=1 // pred_check
      _
    $region15: #{tpu_custom_call.1} parent=1 // pred_check_branch
      %20 = sbr.rel (0) target = $region17
    $region16: #{tpu_custom_call.1} parent=1 // pred_region
      _
    $region17: #{tpu_custom_call.1} parent=1 // pred_fallthru
      _
    // Predicated region
    $region18: #{tpu_custom_call.1} parent=1 // pred_check
      _
    $region19: #{tpu_custom_call.1} parent=1 // pred_check_branch
      %22 = sbr.rel (0) target = $region21
    $region20: #{tpu_custom_call.1} parent=1 // pred_region
      _
    $region21: #{tpu_custom_call.1} parent=1 // pred_fallthru
      _
    // Predicated region
    $region22: #{tpu_custom_call.1} parent=1 // pred_check
      _
    $region23: #{tpu_custom_call.1} parent=1 // pred_check_branch
      %24 = sbr.rel (0) target = $region25
    $region24: #{tpu_custom_call.1} parent=1 // pred_region
      _
    $region25: #{tpu_custom_call.1} parent=1 // pred_fallthru
      _
    // Predicated region
    $region26: #{tpu_custom_call.1} parent=1 // pred_check
      _
    $region27: #{tpu_custom_call.1} parent=1 // pred_check_branch
      %26 = sbr.rel (0) target = $region29
    $region28: #{tpu_custom_call.1} parent=1 // pred_region
      _
    $region29: #{tpu_custom_call.1} parent=1 // pred_fallthru
      _
    %v28 = vld [vmem:[%s0] sm:$0x3]
    %v29 = vpack.c.bf16 %v28, %v28
    %v30 = vld [vmem:[%s1] sm:$0xf]
    %v31 = vld [vmem:[%s1 + $0x4] sm:$0xf]
    %v32 = vld [vmem:[%s2] sm:$0x1]
    %v34 = vlaneseq
    %v35 = vshrl.u32 %v34, 7
    %v36 = vsub.s32 0, %v35
    %v37 = vrot.slane %v32, %v36
    %v41 = vunpack.c.l.b16 %v30
    %v42 = vunpack.c.l.b16 %v31
    %v43 = vpack.c.b16 %v42, %v41
    %vm45 = vcmask 130048
    %v47 = vsel %vm45, %v29, 0
    %49 = vmatprep.subr.bf16.mxu0 0
    %50 = vmatpush1.bf16.msra.mxu0 %v43
    %51 = vmatprep.subr.bf16.mxu0 0
    %52 = vmatpush1.bf16.msra.mxu0 0
    %53 = vmatprep.subr.bf16.mxu0 0
    %54 = vmatpush1.bf16.msra.mxu0 0
    %55 = vmatprep.subr.bf16.mxu0 0
    %56 = vmatpush1.bf16.msra.mxu0 0
    %57 = vmatprep.subr.bf16.mxu0 0
    %58 = vmatpush1.bf16.msra.mxu0 0
    %59 = vmatprep.subr.bf16.mxu0 0
    %60 = vmatpush1.bf16.msra.mxu0 0
    %61 = vmatprep.subr.bf16.mxu0 0
    %62 = vmatpush1.bf16.msra.mxu0 0
    %63 = vmatprep.subr.bf16.mxu0 0
    %64 = vmatpush1.bf16.msra.mxu0 0
    %65 = vmatprep.subr.bf16.mxu0 0
    %66 = vmatpush1.bf16.msra.mxu0 0
    %67 = vmatprep.subr.bf16.mxu0 0
    %68 = vmatpush1.bf16.msra.mxu0 0
    %69 = vmatprep.subr.bf16.mxu0 0
    %70 = vmatpush1.bf16.msra.mxu0 0
    %71 = vmatprep.subr.bf16.mxu0 0
    %72 = vmatpush1.bf16.msra.mxu0 0
    %73 = vmatprep.subr.bf16.mxu0 0
    %74 = vmatpush1.bf16.msra.mxu0 0
    %75 = vmatprep.subr.bf16.mxu0 0
    %76 = vmatpush1.bf16.msra.mxu0 0
    %77 = vmatprep.subr.bf16.mxu0 0
    %78 = vmatpush1.bf16.msra.mxu0 0
    %79 = vmatprep.subr.bf16.mxu0 0
    %80 = vmatpush1.bf16.msra.mxu0 0
    %81 = vmatprep.mubr.bf16.mxu0 0
    %82 = vmatmul.mubr.bf16.gmra.mrb[0].mxu0 %v47
    %v83 = vpop.f32.mrb[0].mxu0
    %v84 = vadd.f32 %v37, %v83
    %v85 = vpop.f32.mrb[0].mxu0
    %v86 = vpop.f32.mrb[0].mxu0
    %v87 = vpop.f32.mrb[0].mxu0
    %88 = vdwg.mxu0
    %v89 = vmax.f32 %v84, 0.0
    %v90 = vpack.c.bf16 %v89, %v89
    %v91 = vld [vmem:[%s3] sm:$0xf]
    %v92 = vld [vmem:[%s3 + $0x4] sm:$0xf]
    %v93 = vld [vmem:[%s3 + $0x8] sm:$0xf]
    %v94 = vld [vmem:[%s3 + $0xc] sm:$0xf]
    %v95 = vld [vmem:[%s3 + $0x10] sm:$0xf]
    %v96 = vld [vmem:[%s3 + $0x14] sm:$0xf]
    %v97 = vld [vmem:[%s3 + $0x18] sm:$0xf]
    %v98 = vld [vmem:[%s3 + $0x1c] sm:$0xf]
    %v99 = vld [vmem:[%s3 + $0x20] sm:$0xf]
    %v100 = vld [vmem:[%s3 + $0x24] sm:$0xf]
    %v101 = vld [vmem:[%s3 + $0x28] sm:$0xf]
    %v102 = vld [vmem:[%s3 + $0x2c] sm:$0xf]
    %v103 = vld [vmem:[%s3 + $0x30] sm:$0xf]
    %v104 = vld [vmem:[%s3 + $0x34] sm:$0xf]
    %v105 = vld [vmem:[%s3 + $0x38] sm:$0xf]
    %v106 = vld [vmem:[%s3 + $0x3c] sm:$0xf]
    %v107 = vld [vmem:[%s4] sm:$0x1]
    %v109 = vlaneseq
    %v110 = vshrl.u32 %v109, 7
    %v111 = vsub.s32 0, %v110
    %v112 = vrot.slane %v107, %v111
    %v130 = vunpack.c.l.b16 %v91
    %v131 = vunpack.c.l.b16 %v92
    %v132 = vunpack.c.l.b16 %v93
    %v133 = vunpack.c.l.b16 %v94
    %v134 = vunpack.c.l.b16 %v95
    %v135 = vunpack.c.l.b16 %v96
    %v136 = vunpack.c.l.b16 %v97
    %v137 = vunpack.c.l.b16 %v98
    %v138 = vunpack.c.l.b16 %v99
    %v139 = vunpack.c.l.b16 %v100
    %v140 = vunpack.c.l.b16 %v101
    %v141 = vunpack.c.l.b16 %v102
    %v142 = vunpack.c.l.b16 %v103
    %v143 = vunpack.c.l.b16 %v104
    %v144 = vunpack.c.l.b16 %v105
    %v145 = vunpack.c.l.b16 %v106
    %v146 = vpack.c.b16 %v131, %v130
    %v147 = vpack.c.b16 %v133, %v132
    %v148 = vpack.c.b16 %v135, %v134
    %v149 = vpack.c.b16 %v137, %v136
    %v150 = vpack.c.b16 %v139, %v138
    %v151 = vpack.c.b16 %v141, %v140
    %v152 = vpack.c.b16 %v143, %v142
    %v153 = vpack.c.b16 %v145, %v144
    %162 = vmatprep.subr.bf16.mxu0 0
    %163 = vmatpush1.bf16.msra.mxu0 %v146
    %164 = vmatprep.subr.bf16.mxu0 0
    %165 = vmatpush1.bf16.msra.mxu0 %v147
    %166 = vmatprep.subr.bf16.mxu0 0
    %167 = vmatpush1.bf16.msra.mxu0 %v148
    %168 = vmatprep.subr.bf16.mxu0 0
    %169 = vmatpush1.bf16.msra.mxu0 %v149
    %170 = vmatprep.subr.bf16.mxu0 0
    %171 = vmatpush1.bf16.msra.mxu0 %v150
    %172 = vmatprep.subr.bf16.mxu0 0
    %173 = vmatpush1.bf16.msra.mxu0 %v151
    %174 = vmatprep.subr.bf16.mxu0 0
    %175 = vmatpush1.bf16.msra.mxu0 %v152
    %176 = vmatprep.subr.bf16.mxu0 0
    %177 = vmatpush1.bf16.msra.mxu0 %v153
    %178 = vmatprep.subr.bf16.mxu0 0
    %179 = vmatpush1.bf16.msra.mxu0 0
    %180 = vmatprep.subr.bf16.mxu0 0
    %181 = vmatpush1.bf16.msra.mxu0 0
    %182 = vmatprep.subr.bf16.mxu0 0
    %183 = vmatpush1.bf16.msra.mxu0 0
    %184 = vmatprep.subr.bf16.mxu0 0
    %185 = vmatpush1.bf16.msra.mxu0 0
    %186 = vmatprep.subr.bf16.mxu0 0
    %187 = vmatpush1.bf16.msra.mxu0 0
    %188 = vmatprep.subr.bf16.mxu0 0
    %189 = vmatpush1.bf16.msra.mxu0 0
    %190 = vmatprep.subr.bf16.mxu0 0
    %191 = vmatpush1.bf16.msra.mxu0 0
    %192 = vmatprep.subr.bf16.mxu0 0
    %193 = vmatpush1.bf16.msra.mxu0 0
    %194 = vmatprep.mubr.bf16.mxu0 0
    %195 = vmatmul.mubr.bf16.gmra.mrb[0].mxu0 %v90
    %v196 = vpop.f32.mrb[0].mxu0
    %v197 = vadd.f32 %v112, %v196
    %v198 = vpop.f32.mrb[0].mxu0
    %v199 = vpop.f32.mrb[0].mxu0
    %v200 = vpop.f32.mrb[0].mxu0
    %201 = vdwg.mxu0
    %v202 = vmax.f32 %v197, 0.0
    %v203 = vpack.c.bf16 %v202, %v202
    %v204 = vld [vmem:[%s5] sm:$0xf]
    %v205 = vld [vmem:[%s5 + $0x4] sm:$0xf]
    %v206 = vld [vmem:[%s5 + $0x8] sm:$0xf]
    %v207 = vld [vmem:[%s5 + $0xc] sm:$0xf]
    %v208 = vld [vmem:[%s5 + $0x10] sm:$0xf]
    %v209 = vld [vmem:[%s5 + $0x14] sm:$0xf]
    %v210 = vld [vmem:[%s5 + $0x18] sm:$0xf]
    %v211 = vld [vmem:[%s5 + $0x1c] sm:$0xf]
    %v212 = vld [vmem:[%s5 + $0x20] sm:$0xf]
    %v213 = vld [vmem:[%s5 + $0x24] sm:$0xf]
    %v214 = vld [vmem:[%s5 + $0x28] sm:$0xf]
    %v215 = vld [vmem:[%s5 + $0x2c] sm:$0xf]
    %v216 = vld [vmem:[%s5 + $0x30] sm:$0xf]
    %v217 = vld [vmem:[%s5 + $0x34] sm:$0xf]
    %v218 = vld [vmem:[%s5 + $0x38] sm:$0xf]
    %v219 = vld [vmem:[%s5 + $0x3c] sm:$0xf]
    %v220 = vld [vmem:[%s6] sm:$0x1]
    %v222 = vlaneseq
    %v223 = vshrl.u32 %v222, 7
    %v224 = vsub.s32 0, %v223
    %v225 = vrot.slane %v220, %v224
    %v243 = vunpack.c.l.b16 %v204
    %v244 = vunpack.c.l.b16 %v205
    %v245 = vunpack.c.l.b16 %v206
    %v246 = vunpack.c.l.b16 %v207
    %v247 = vunpack.c.l.b16 %v208
    %v248 = vunpack.c.l.b16 %v209
    %v249 = vunpack.c.l.b16 %v210
    %v250 = vunpack.c.l.b16 %v211
    %v251 = vunpack.c.l.b16 %v212
    %v252 = vunpack.c.l.b16 %v213
    %v253 = vunpack.c.l.b16 %v214
    %v254 = vunpack.c.l.b16 %v215
    %v255 = vunpack.c.l.b16 %v216
    %v256 = vunpack.c.l.b16 %v217
    %v257 = vunpack.c.l.b16 %v218
    %v258 = vunpack.c.l.b16 %v219
    %v259 = vpack.c.b16 %v244, %v243
    %v260 = vpack.c.b16 %v246, %v245
    %v261 = vpack.c.b16 %v248, %v247
    %v262 = vpack.c.b16 %v250, %v249
    %v263 = vpack.c.b16 %v252, %v251
    %v264 = vpack.c.b16 %v254, %v253
    %v265 = vpack.c.b16 %v256, %v255
    %v266 = vpack.c.b16 %v258, %v257
    %275 = vmatprep.subr.bf16.mxu0 0
    %276 = vmatpush1.bf16.msra.mxu0 %v259
    %277 = vmatprep.subr.bf16.mxu0 0
    %278 = vmatpush1.bf16.msra.mxu0 %v260
    %279 = vmatprep.subr.bf16.mxu0 0
    %280 = vmatpush1.bf16.msra.mxu0 %v261
    %281 = vmatprep.subr.bf16.mxu0 0
    %282 = vmatpush1.bf16.msra.mxu0 %v262
    %283 = vmatprep.subr.bf16.mxu0 0
    %284 = vmatpush1.bf16.msra.mxu0 %v263
    %285 = vmatprep.subr.bf16.mxu0 0
    %286 = vmatpush1.bf16.msra.mxu0 %v264
    %287 = vmatprep.subr.bf16.mxu0 0
    %288 = vmatpush1.bf16.msra.mxu0 %v265
    %289 = vmatprep.subr.bf16.mxu0 0
    %290 = vmatpush1.bf16.msra.mxu0 %v266
    %291 = vmatprep.subr.bf16.mxu0 0
    %292 = vmatpush1.bf16.msra.mxu0 0
    %293 = vmatprep.subr.bf16.mxu0 0
    %294 = vmatpush1.bf16.msra.mxu0 0
    %295 = vmatprep.subr.bf16.mxu0 0
    %296 = vmatpush1.bf16.msra.mxu0 0
    %297 = vmatprep.subr.bf16.mxu0 0
    %298 = vmatpush1.bf16.msra.mxu0 0
    %299 = vmatprep.subr.bf16.mxu0 0
    %300 = vmatpush1.bf16.msra.mxu0 0
    %301 = vmatprep.subr.bf16.mxu0 0
    %302 = vmatpush1.bf16.msra.mxu0 0
    %303 = vmatprep.subr.bf16.mxu0 0
    %304 = vmatpush1.bf16.msra.mxu0 0
    %305 = vmatprep.subr.bf16.mxu0 0
    %306 = vmatpush1.bf16.msra.mxu0 0
    %307 = vmatprep.mubr.bf16.mxu0 0
    %308 = vmatmul.mubr.bf16.gmra.mrb[0].mxu0 %v203
    %v309 = vpop.f32.mrb[0].mxu0
    %v310 = vadd.f32 %v225, %v309
    %v311 = vpop.f32.mrb[0].mxu0
    %v312 = vpop.f32.mrb[0].mxu0
    %v313 = vpop.f32.mrb[0].mxu0
    %314 = vdwg.mxu0
    %vm315 = vcmask 58368
    %316 = vst.msk [vmem:[#allocation2] sm:$0x3] %vm315, %v310
    // Predicated region
    $region30: #{tpu_custom_call.1} parent=1 // pred_check
      _
    $region31: #{tpu_custom_call.1} parent=1 // pred_check_branch
      %318 = sbr.rel (0) target = $region33
    $region32: #{tpu_custom_call.1} parent=1 // pred_region
      %s320 = ssub.s32 32, 32
      %321 = vsyncadd [#allocation3], %s320
      %s323 = sshll.u32 [#allocation2], 4
      %s324 = int_to_ptr.vmem [resolvable:$true] %s323
      %326 = dma.vmem_to_hbm [thread:$0]  %s324, 32, %s7, [#allocation3]
    $region33: #{tpu_custom_call.1} parent=1 // pred_fallthru
      _
    // Predicated region
    $region34: #{tpu_custom_call.1} parent=1 // pred_check
      _
    $region35: #{tpu_custom_call.1} parent=1 // pred_check_branch
      %328 = sbr.rel (0) target = $region37
    $region36: #{tpu_custom_call.1} parent=1 // pred_region
      %329 = dma.done [#allocation3], 32
    $region37: #{tpu_custom_call.1} parent=1 // pred_fallthru
      _
    %330 = vsyncpa [#allocation3], 1

</llo_original>
